<compile_context>
chip_gen: v7x
topology: tpu7x:2x2x1
jax: 0.10.0
libtpu: 0.0.40
codegen_flags: <defaults>
</compile_context>

<pallas_src>
import jax
import jax.numpy as jnp
from jax.experimental import pallas as pl
from jax.experimental.pallas import tpu as pltpu


# ---------------------------------------------------------------------------
# Hardware-generation helpers
# ---------------------------------------------------------------------------
def _tpu_generation():
    try:
        kind = jax.devices()[0].device_kind.lower()
    except Exception:
        return None
    for tag, gen in (("v7", 7), ("7x", 7), ("v6", 6), ("v5", 5), ("v4", 4)):
        if tag in kind:
            return gen
    return None


def _hw_params():
    gen = _tpu_generation()
    if gen is not None and gen >= 7:
        # 2 TensorCores, 64 MiB physical VMEM per TC.
        return dict(min_steps=8, two_cores=True, bf16_native=True,
                    vmem_budget_bytes=40 << 20, vmem_limit_bytes=48 << 20)
    if gen == 6:
        # Single TC, 128 MiB VMEM, bf16 VPU.
        return dict(min_steps=4, two_cores=False, bf16_native=True,
                    vmem_budget_bytes=80 << 20, vmem_limit_bytes=96 << 20)
    if gen == 5:
        # Single TC, 128 MiB VMEM, no bf16 VPU -> keep f32 math.
        return dict(min_steps=4, two_cores=False, bf16_native=False,
                    vmem_budget_bytes=80 << 20, vmem_limit_bytes=96 << 20)
    # Unknown generation: conservative sizing that also fits v7x.
    return dict(min_steps=8, two_cores=True, bf16_native=True,
                vmem_budget_bytes=40 << 20, vmem_limit_bytes=48 << 20)


def _compute_dtype(x_dtype, bf16_native):
    if jnp.dtype(x_dtype) == jnp.dtype(jnp.bfloat16) and bf16_native:
        return jnp.bfloat16
    return jnp.float32


# ---------------------------------------------------------------------------
# Tiling plan
# ---------------------------------------------------------------------------
def _plan_tiling(rows, hw, itemsize, *, min_steps, two_cores, vmem_budget_bytes):
    """Returns ("fused", tile_rows, hw) or ("two_pass", tile_rows, tile_hw)."""
    min_rows = max(8, 32 // itemsize)          # 8 (f32), 16 (bf16), 32 (8-bit)

    # Per-element VMEM cost of the fused kernel: double-buffered input +
    # double-buffered output (itemsize each) plus ~2 f32-sized elementwise
    # temporaries in the body.
    bytes_per_elem = 4 * itemsize + 8
    bytes_per_row = hw * bytes_per_elem

    if rows % min_rows == 0:
        candidates = [t for t in range(min_rows, rows + 1, min_rows)
                      if rows % t == 0]
    else:
        # Rows not a multiple of the sublane tile: a full-extent block is
        # still legal.
        candidates = [rows]
    smallest = candidates[0]

    if smallest * bytes_per_row > vmem_budget_bytes:
        # Even the minimum row tile at full H*W does not fit in VMEM:
        # chunk the lane (H*W) axis and use the two-pass pipeline.
        tile_rows = smallest
        hw_cap = max(128, vmem_budget_bytes // (tile_rows * bytes_per_elem))
        tile_hw = 0
        t = 128
        while t <= min(hw, hw_cap):
            if hw % t == 0:
                tile_hw = t
            t += 128
        if tile_hw == 0:
            raise ValueError(
                "FRN Pallas kernel: cannot fit even a (%d, 128) tile in the "
                "VMEM budget (%d bytes)" % (tile_rows, vmem_budget_bytes))
        return ("two_pass", tile_rows, tile_hw)

    # Fused single-pass path: largest row tile that fits the VMEM budget,
    # best-effort keeping enough grid steps for pipelining (and >= 2 steps
    # for v7x's two TensorCores).
    vmem_cap = vmem_budget_bytes // bytes_per_row
    if rows >= min_steps * smallest:
        step_cap = max(smallest, rows // min_steps)
    elif two_cores and rows >= 2 * smallest:
        step_cap = max(smallest, rows // 2)
    else:
        step_cap = rows
    cap = max(smallest, min(vmem_cap, step_cap, rows))
    tile_rows = smallest
    for t in candidates:
        if t <= cap:
            tile_rows = t
    return ("fused", tile_rows, hw)


# ---------------------------------------------------------------------------
# Kernels
# ---------------------------------------------------------------------------
def _make_fused_kernel(compute_dtype):
    cd = compute_dtype

    def kernel(x_ref, p_ref, o_ref):
        # p_ref columns: [|eps|, gamma, beta, tau] per row (= per (n, c)).
        p = p_ref[...]
        eps_abs = p[:, 0:1]
        gamma = p[:, 1:2]
        beta = p[:, 2:3]
        tau = p[:, 3:4]

        # nu2 = mean(x^2) over the lane axis, always in f32.
        xs = x_ref[...].astype(jnp.float32)
        nu2 = jnp.mean(xs * xs, axis=-1, keepdims=True)          # (TM, 1)
        inv = jax.lax.rsqrt(nu2 + eps_abs)                        # (TM, 1)

        # Fold gamma into the per-row scale (one fewer full-block multiply),
        # then do the normalize/affine/max in the compute dtype.
        scale = (gamma * inv).astype(cd)                           # (TM, 1)
        o_ref[...] = jnp.maximum(
            x_ref[...].astype(cd) * scale + beta.astype(cd), tau.astype(cd)
        ).astype(o_ref.dtype)

    return kernel


def _make_sumsq_kernel(inv_hw):
    def kernel(x_ref, nu2_ref):
        j = pl.program_id(1)

        @pl.when(j == 0)
        def _():
            nu2_ref[...] = jnp.zeros_like(nu2_ref)

        xs = x_ref[...].astype(jnp.float32)
        nu2_ref[...] += jnp.sum(xs * xs, axis=-1, keepdims=True)

        @pl.when(j == pl.num_programs(1) - 1)
        def _():
            nu2_ref[...] = nu2_ref[...] * inv_hw

    return kernel


def _make_norm_kernel(compute_dtype):
    cd = compute_dtype

    def kernel(p_ref, nu2_ref, x_ref, o_ref):
        p = p_ref[...]
        eps_abs = p[:, 0:1]
        gamma = p[:, 1:2]
        beta = p[:, 2:3]
        tau = p[:, 3:4]
        inv = jax.lax.rsqrt(nu2_ref[...] + eps_abs)                # (TM, 1)
        scale = (gamma * inv).astype(cd)
        o_ref[...] = jnp.maximum(
            x_ref[...].astype(cd) * scale + beta.astype(cd), tau.astype(cd)
        ).astype(o_ref.dtype)

    return kernel


# ---------------------------------------------------------------------------
# Wrapper
# ---------------------------------------------------------------------------
def filter_response_norm_4d(x, eps, gamma, beta, tau, *, vmem_budget_bytes=None):
    """x: (N, C, H, W); eps/gamma/beta/tau: (1, C, 1, 1). Returns (N, C, H, W)."""
    N, C, H, W = x.shape
    rows = N * C
    hw = H * W
    assert hw % 128 == 0, "H*W must be a multiple of 128 for lane tiling"

    hwp = _hw_params()
    itemsize = jnp.dtype(x.dtype).itemsize
    budget = vmem_budget_bytes if vmem_budget_bytes is not None else hwp["vmem_budget_bytes"]
    plan = _plan_tiling(rows, hw, itemsize,
                        min_steps=hwp["min_steps"],
                        two_cores=hwp["two_cores"],
                        vmem_budget_bytes=budget)
    cd = _compute_dtype(x.dtype, hwp["bf16_native"])
    vmem_limit = hwp["vmem_limit_bytes"]

    # Flatten to (N*C, H*W); pack params per-row into a single (N*C, 4) f32
    # array with columns [|eps|, gamma, beta, tau] (abs(eps) folded here).
    x2d = x.reshape(rows, hw)

    def per_row(p):
        return jnp.broadcast_to(p.reshape(1, C), (N, C)).reshape(rows)

    params = jnp.stack(
        [per_row(jnp.abs(eps)), per_row(gamma), per_row(beta), per_row(tau)],
        axis=-1,
    ).astype(jnp.float32)                                          # (rows, 4)

    if plan[0] == "fused":
        _, tile_rows, _ = plan
        row_spec = pl.BlockSpec((tile_rows, hw), lambda i: (i, 0))
        par_spec = pl.BlockSpec((tile_rows, 4), lambda i: (i, 0))
        out2d = pl.pallas_call(
            _make_fused_kernel(cd),
            out_shape=jax.ShapeDtypeStruct((rows, hw), x.dtype),
            grid_spec=pltpu.PrefetchScalarGridSpec(
                num_scalar_prefetch=0,
                grid=(rows // tile_rows,),
                in_specs=[row_spec, par_spec],
                out_specs=row_spec,
            ),
            compiler_params=pltpu.CompilerParams(
                dimension_semantics=("parallel",),
                vmem_limit_bytes=vmem_limit,
            ),
        )(x2d, params)
    else:
        # Two-pass path for large H*W: pass 1 reduces sum(x^2) per row with
        # an hw-chunked grid, pass 2 normalizes with the same chunking.
        _, tile_rows, tile_hw = plan
        grid = (rows // tile_rows, hw // tile_hw)

        nu2 = pl.pallas_call(
            _make_sumsq_kernel(1.0 / hw),
            out_shape=jax.ShapeDtypeStruct((rows, 1), jnp.float32),
            grid_spec=pltpu.PrefetchScalarGridSpec(
                num_scalar_prefetch=0,
                grid=grid,
                in_specs=[pl.BlockSpec((tile_rows, tile_hw), lambda i, j: (i, j))],
                out_specs=pl.BlockSpec((tile_rows, 1), lambda i, j: (i, 0)),
            ),
            compiler_params=pltpu.CompilerParams(
                dimension_semantics=("parallel", "arbitrary"),
                vmem_limit_bytes=vmem_limit,
            ),
        )(x2d)

        out2d = pl.pallas_call(
            _make_norm_kernel(cd),
            out_shape=jax.ShapeDtypeStruct((rows, hw), x.dtype),
            grid_spec=pltpu.PrefetchScalarGridSpec(
                num_scalar_prefetch=0,
                grid=grid,
                in_specs=[pl.BlockSpec((tile_rows, 4), lambda i, j: (i, 0)),
                          pl.BlockSpec((tile_rows, 1), lambda i, j: (i, 0)),
                          pl.BlockSpec((tile_rows, tile_hw), lambda i, j: (i, j))],
                out_specs=pl.BlockSpec((tile_rows, tile_hw), lambda i, j: (i, j)),
            ),
            compiler_params=pltpu.CompilerParams(
                dimension_semantics=("parallel", "parallel"),
                vmem_limit_bytes=vmem_limit,
            ),
        )(params, nu2, x2d)

    return out2d.reshape(N, C, H, W)


def frn_reference(x, eps, gamma, beta, tau):
    nu2 = jnp.mean(jnp.square(x), axis=(2, 3), keepdims=True)
    xn = x * jax.lax.rsqrt(nu2 + jnp.abs(eps))
    return jnp.maximum(gamma * xn + beta, tau)


if __name__ == "__main__":
    key = jax.random.PRNGKey(0)
    N, C, H, W = 2, 4, 16, 16
    x = jax.random.normal(key, (N, C, H, W), dtype=jnp.float32)

    # Parameters initialized exactly as in FilterResponseNormNd.__init__.
    shape = (1, C, 1, 1)
    eps = jnp.ones(shape, jnp.float32) * 1e-6
    gamma = jnp.ones(shape, jnp.float32)
    beta = jnp.zeros(shape, jnp.float32)
    tau = jnp.zeros(shape, jnp.float32)

    out = jax.block_until_ready(filter_response_norm_4d(x, eps, gamma, beta, tau))
    ref = frn_reference(x, eps, gamma, beta, tau)
    assert out.shape == (N, C, H, W)
    assert jnp.allclose(out, ref, atol=1e-5, rtol=1e-5), "fused path mismatch"

    # Also exercise the large-H*W two-pass fallback by forcing a tiny VMEM
    # budget (validates the hw-chunked reduce + normalize path).
    x2 = jax.random.normal(jax.random.PRNGKey(1), (2, 4, 16, 256), dtype=jnp.float32)
    out2 = jax.block_until_ready(
        filter_response_norm_4d(x2, eps, gamma, beta, tau,
                                vmem_budget_bytes=64 * 1024))
    ref2 = frn_reference(x2, eps, gamma, beta, tau)
    assert jnp.allclose(out2, ref2, atol=1e-5, rtol=1e-5), "two-pass path mismatch"

    print("KERNEL_OK")
</pallas_src>

<mosaic_0001>
module attributes {stable_mosaic.version = 11 : i64} {
  func.func @kernel(%arg0: i32, %arg1: memref<8x256xf32, #tpu.memory_space<vmem>>, %arg2: memref<8x4xf32, #tpu.memory_space<vmem>>, %arg3: memref<8x256xf32, #tpu.memory_space<vmem>>) attributes {dimension_semantics = [#tpu.dimension_semantics<parallel>], iteration_bounds = array<i64: 1>, scalar_prefetch = 0 : i64, scratch_operands = 0 : i64, tpu.core_type = #tpu.core_type<tc>, window_params = [{transform_indices = @transform_0, window_bounds = array<i64: 8, 256>}, {transform_indices = @transform_1, window_bounds = array<i64: 8, 4>}, {transform_indices = @transform_2, window_bounds = array<i64: 8, 256>}]} {
    %c0 = arith.constant 0 : index
    %c0_0 = arith.constant 0 : index
    %0 = vector.load %arg2[%c0, %c0_0] : memref<8x4xf32, #tpu.memory_space<vmem>>, vector<8x4xf32>
    %1 = vector.extract_strided_slice %0 {offsets = [0, 0], sizes = [8, 1], strides = [1, 1]} : vector<8x4xf32> to vector<8x1xf32>
    %2 = vector.extract_strided_slice %0 {offsets = [0, 1], sizes = [8, 1], strides = [1, 1]} : vector<8x4xf32> to vector<8x1xf32>
    %3 = vector.extract_strided_slice %0 {offsets = [0, 2], sizes = [8, 1], strides = [1, 1]} : vector<8x4xf32> to vector<8x1xf32>
    %4 = vector.extract_strided_slice %0 {offsets = [0, 3], sizes = [8, 1], strides = [1, 1]} : vector<8x4xf32> to vector<8x1xf32>
    %c0_1 = arith.constant 0 : index
    %c0_2 = arith.constant 0 : index
    %5 = vector.load %arg1[%c0_1, %c0_2] : memref<8x256xf32, #tpu.memory_space<vmem>>, vector<8x256xf32>
    %6 = arith.mulf %5, %5 : vector<8x256xf32>
    %cst = arith.constant dense<0.000000e+00> : vector<8xf32>
    %7 = vector.multi_reduction <add>, %6, %cst [1] : vector<8x256xf32> to vector<8xf32>
    %8 = vector.shape_cast %7 : vector<8xf32> to vector<8x1xf32>
    %cst_3 = arith.constant 2.560000e+02 : f32
    %9 = vector.broadcast %cst_3 : f32 to vector<8x1xf32>
    %10 = arith.divf %8, %9 : vector<8x1xf32>
    %11 = arith.addf %10, %1 : vector<8x1xf32>
    %12 = math.rsqrt %11 : vector<8x1xf32>
    %13 = arith.mulf %2, %12 : vector<8x1xf32>
    %c0_4 = arith.constant 0 : index
    %c0_5 = arith.constant 0 : index
    %14 = vector.load %arg1[%c0_4, %c0_5] : memref<8x256xf32, #tpu.memory_space<vmem>>, vector<8x256xf32>
    %15 = vector.broadcast %13 : vector<8x1xf32> to vector<8x256xf32>
    %16 = arith.mulf %14, %15 : vector<8x256xf32>
    %17 = vector.broadcast %3 : vector<8x1xf32> to vector<8x256xf32>
    %18 = arith.addf %16, %17 : vector<8x256xf32>
    %19 = vector.broadcast %4 : vector<8x1xf32> to vector<8x256xf32>
    %20 = arith.maximumf %18, %19 : vector<8x256xf32>
    %c0_6 = arith.constant 0 : index
    %c0_7 = arith.constant 0 : index
    %21 = vector.load %arg3[%c0_6, %c0_7] : memref<8x256xf32, #tpu.memory_space<vmem>>, vector<8x256xf32>
    tpu.vector_store %arg3[%c0_6, %c0_7], %20 {strides = array<i32>} : memref<8x256xf32, #tpu.memory_space<vmem>>, vector<8x256xf32>,
    return
  }
  func.func @transform_0(%arg0: i32) -> (i32, i32) {
    %c0_i32 = arith.constant 0 : i32
    %c0_i32_0 = arith.constant 0 : i32
    return %arg0, %c0_i32 : i32, i32
  }
  func.func @transform_1(%arg0: i32) -> (i32, i32) {
    %c0_i32 = arith.constant 0 : i32
    %c0_i32_0 = arith.constant 0 : i32
    return %arg0, %c0_i32 : i32, i32
  }
  func.func @transform_2(%arg0: i32) -> (i32, i32) {
    %c0_i32 = arith.constant 0 : i32
    %c0_i32_0 = arith.constant 0 : i32
    return %arg0, %c0_i32 : i32, i32
  }
}

</mosaic_0001>

<llo_original>
// kernel: tpu_custom_call.1
$region0: #{tpu_custom_call.1}
  #allocation0 [shape = 'u32[]', space=smem, size = 0x4, offset = 0x4, fixed_abs, tag = 'smem constant byte address 0x4 - core index']
  #allocation1 [shape = 'u32[144,128]{1,0:T(1,128)}', space=vmem, size = 0x12000, scoped, tag = 'internal scratch']
  %s0 = inlined_call_operand.hbm [shape: f32[8,256], index: 0, kind: input, shape index: {}]
  %s1 = inlined_call_operand.vmem [shape: f32[8,4], index: 1, kind: input, shape index: {}]
  %s2 = inlined_call_operand.hbm [shape: f32[8,256], index: 2, kind: output, shape index: {}]
  %s3 = sld [smem:[#allocation0]]
  $region22: #{tpu_custom_call.1} parent=0
    _
  %s5 = ssub.s32 1, %s3
  %s6 = scalar_select 0, %s5, %s3
  $region1: #{tpu_custom_call.1} parent=0
    #allocation2 [shape = 'u8[8192]{0}', space=vmem, size = 0x2000, scoped, tag = 'input window, operand 0, single buffered']
    #allocation3 [shape = 's32[1]{0}', space=sflag, size = 0x4, scoped, tag = 'scoped memory for tpu_custom_call.1']
    #allocation4 [shape = 's32[1]{0}', space=sflag, size = 0x4, scoped, tag = 'scoped memory for tpu_custom_call.1']
    #allocation5 [shape = 'u8[8192]{0}', space=vmem, size = 0x2000, scoped, tag = 'output window, operand 0, single buffered']
    %7 = vsyncpa [#allocation3], 0
    %8 = vsyncpa [#allocation4], 0
    // Predicated region
    $region2: #{tpu_custom_call.1} parent=1 // pred_check
      _
    $region3: #{tpu_custom_call.1} parent=1 // pred_check_branch
      %10 = sbr.rel (0) target = $region5
    $region4: #{tpu_custom_call.1} parent=1 // pred_region
      %s12 = ssub.s32 256, 256
      %13 = vsyncadd [#allocation3], %s12
      %s15 = sshll.u32 [#allocation2], 4
      %s16 = int_to_ptr.vmem [resolvable:$true] %s15
      %18 = dma.hbm_to_vmem [thread:$0]  %s0, 256, %s16, [#allocation3]
    $region5: #{tpu_custom_call.1} parent=1 // pred_fallthru
      _
    // Predicated region
    $region6: #{tpu_custom_call.1} parent=1 // pred_check
      _
    $region7: #{tpu_custom_call.1} parent=1 // pred_check_branch
      %20 = sbr.rel (0) target = $region9
    $region8: #{tpu_custom_call.1} parent=1 // pred_region
      _
    $region9: #{tpu_custom_call.1} parent=1 // pred_fallthru
      _
    // Predicated region
    $region10: #{tpu_custom_call.1} parent=1 // pred_check
      _
    $region11: #{tpu_custom_call.1} parent=1 // pred_check_branch
      %22 = sbr.rel (0) target = $region13
    $region12: #{tpu_custom_call.1} parent=1 // pred_region
      %23 = dma.done [#allocation3], 256
    $region13: #{tpu_custom_call.1} parent=1 // pred_fallthru
      _
    %v24 = vld [vmem:[%s1] sm:$0xff]
    %v25 = vld [vmem:[#allocation2] sm:$0xff]
    %v26 = vld [vmem:[#allocation2 + $0x8] sm:$0xff]
    %v27 = vmul.f32 %v25, %v25
    %v28 = vmul.f32 %v26, %v26
    %v29 = vadd.f32 %v27, %v28
    %30 = vadd.xlane.f32.xlu0 %v29
    %v31 = vpop.xlane.xlu0 %30
    %v32 = vrcp.pop 256.0
    %v33 = vmul.f32 %v31, %v32
    %v34 = vadd.f32 %v33, %v24
    %v35 = vrsqrt.pop %v34
    %37 = vrot.lane.b32.xlu0 %v35, 1
    %v38 = vpop.permute.xlu0 %37
    %v40 = vmul.f32 %v24, %v38
    %42 = vset.pattern.permute.xlu0 1
    %43 = vperm.xlu0 %42, %v40
    %v44 = vpop.permute.xlu0 %43
    %v46 = vmul.f32 %v25, %v44
    %v47 = vmul.f32 %v26, %v44
    %49 = vset.pattern.permute.xlu0 2
    %50 = vperm.xlu0 %49, %v24
    %v51 = vpop.permute.xlu0 %50
    %v53 = vadd.f32 %v46, %v51
    %v54 = vadd.f32 %v47, %v51
    %55 = vset.pattern.permute.xlu0 3
    %56 = vperm.xlu0 %55, %v24
    %v57 = vpop.permute.xlu0 %56
    %v59 = vmax.f32 %v53, %v57
    %v60 = vmax.f32 %v54, %v57
    %61 = vst [vmem:[#allocation5] sm:$0xff] %v59
    %62 = vst [vmem:[#allocation5 + $0x8] sm:$0xff] %v60
    // Predicated region
    $region14: #{tpu_custom_call.1} parent=1 // pred_check
      _
    $region15: #{tpu_custom_call.1} parent=1 // pred_check_branch
      %64 = sbr.rel (0) target = $region17
    $region16: #{tpu_custom_call.1} parent=1 // pred_region
      %s66 = ssub.s32 256, 256
      %67 = vsyncadd [#allocation4], %s66
      %s69 = sshll.u32 [#allocation5], 4
      %s70 = int_to_ptr.vmem [resolvable:$true] %s69
      %72 = dma.vmem_to_hbm [thread:$0]  %s70, 256, %s2, [#allocation4]
    $region17: #{tpu_custom_call.1} parent=1 // pred_fallthru
      _
    // Predicated region
    $region18: #{tpu_custom_call.1} parent=1 // pred_check
      _
    $region19: #{tpu_custom_call.1} parent=1 // pred_check_branch
      %74 = sbr.rel (0) target = $region21
    $region20: #{tpu_custom_call.1} parent=1 // pred_region
      %75 = dma.done [#allocation4], 256
    $region21: #{tpu_custom_call.1} parent=1 // pred_fallthru
      _
    %76 = vsyncpa [#allocation3], 1
    %77 = vsyncpa [#allocation4], 1

</llo_original>
